<compile_context>
chip_gen: v6e
topology: v6e:2x2x1
jax: 0.10.0
libtpu: 0.0.40
codegen_flags: <defaults>
</compile_context>

<pallas_src>
from functools import partial
from math import sqrt

import jax
import jax.numpy as jnp
from jax.experimental import pallas as pl
from jax.experimental.pallas import tpu as pltpu

LEAKY_SLOPE = 0.01  # PyTorch F.leaky_relu default negative_slope
LANES = 128         # TPU vreg lane width
MAX_TM = 4096       # 4096*128*4 B = 2 MiB per tile; double-buffered in+out =
                    # 8 MiB, safe under v5e's 16 MiB default scoped VMEM.


def _net_kernel(w1_ref, b1_ref, w2_ref, x_ref, o_ref, *, width):
    # w1_ref / b1_ref / w2_ref : (width,) f32 scalars in SMEM (grid-resident)
    # x_ref / o_ref            : (tm, 128) lane-dense batch tile in VMEM
    x = x_ref[...]

    def term(k):
        h = x * w1_ref[k] + b1_ref[k]            # fc1 (in_features == 1)
        h = jnp.maximum(h, LEAKY_SLOPE * h)      # leaky_relu (0 < slope < 1)
        return w2_ref[k] * h                     # fc2 row (out_features == 1, no bias)

    # width is tiny and static: unroll. Seed the accumulator with the k=0
    # term instead of a zeros init (saves a vreg write per tile).
    acc = term(0)
    for k in range(1, width):
        acc = acc + term(k)
    o_ref[...] = acc


def _pick_tiling(rows, max_tm=MAX_TM):
    """Choose (tm, num_steps): tm a multiple of 8 and <= max_tm, at least two
    (and an even number of) grid steps when the batch is big enough so both
    v7x TensorCores get work, and padding waste bounded to < 8 rows/step."""
    rows8 = -(-rows // 8) * 8             # round up to the 8-sublane tiling
    num_steps = -(-rows8 // max_tm)       # fewest steps honoring the VMEM cap
    if rows8 >= 16:
        num_steps = max(num_steps, 2)     # keep both TensorCores busy (v7x)
        if num_steps % 2:
            num_steps += 1                # even step count splits evenly
    tm = -(-rows8 // (num_steps * 8)) * 8
    return tm, num_steps


def net_forward(x, w1, b1, w2):
    """x: (N, 1) f32; w1: (width, 1); b1: (width,); w2: (1, width) -> (N, 1)."""
    n = x.shape[0]
    width = int(w1.size)

    w1_s = w1.reshape(width).astype(jnp.float32)
    b1_s = b1.reshape(width).astype(jnp.float32)
    w2_s = w2.reshape(width).astype(jnp.float32)

    rows = pl.cdiv(n, LANES)
    tm, num_steps = _pick_tiling(rows)
    rows_padded = num_steps * tm
    pad_n = rows_padded * LANES

    x_flat = x.reshape(n).astype(jnp.float32)
    if pad_n == n:
        # Fast path: no pad copy, reshape is layout-only.
        x2d = x_flat.reshape(rows_padded, LANES)
    else:
        # allow_input_fusion below lets XLA fuse this pad/reshape into the
        # pallas_call input instead of materializing a padded HBM copy.
        x2d = jnp.pad(x_flat, (0, pad_n - n)).reshape(rows_padded, LANES)

    out2d = pl.pallas_call(
        partial(_net_kernel, width=width),
        out_shape=jax.ShapeDtypeStruct((rows_padded, LANES), jnp.float32),
        grid=(num_steps,),
        in_specs=[
            pl.BlockSpec(memory_space=pltpu.MemorySpace.SMEM),    # w1 (width,)
            pl.BlockSpec(memory_space=pltpu.MemorySpace.SMEM),    # b1 (width,)
            pl.BlockSpec(memory_space=pltpu.MemorySpace.SMEM),    # w2 (width,)
            pl.BlockSpec((tm, LANES), lambda i: (i, 0)),          # x tile
        ],
        out_specs=pl.BlockSpec((tm, LANES), lambda i: (i, 0)),    # out tile
        compiler_params=pltpu.CompilerParams(
            dimension_semantics=("parallel",),        # shard batch over TCs
            allow_input_fusion=[False, False, False, True],
        ),
        cost_estimate=pl.CostEstimate(
            flops=6 * width * pad_n,
            bytes_accessed=8 * pad_n,   # 4 B read + 4 B write per element
            transcendentals=0,
        ),
    )(w1_s, b1_s, w2_s, x2d)

    if pad_n == n:
        return out2d.reshape(n, 1)
    # Drop the padding and restore the (N, 1) module output shape.
    return out2d.reshape(pad_n)[:n].reshape(n, 1)


def init_params(key, width=2, fix_w1=False, scale=1.0):
    """Deterministic parameter init mirroring Net.__init__."""
    k_w1, k_b1, k_w2 = jax.random.split(key, 3)
    if fix_w1:
        w1 = jnp.full((width, 1), scale, dtype=jnp.float32)
    else:
        w1 = jax.random.uniform(k_w1, (width, 1), minval=-scale, maxval=scale,
                                dtype=jnp.float32)
    b1 = jax.random.uniform(k_b1, (width,), minval=-scale, maxval=scale,
                            dtype=jnp.float32)
    b1 = jnp.sort(b1)  # __init__ sorts the fc1 bias
    bound = 1.0 / (scale * sqrt(width))
    w2 = jax.random.uniform(k_w2, (1, width), minval=-bound, maxval=bound,
                            dtype=jnp.float32)
    return w1, b1, w2


def _reference(x, w1, b1, w2):
    h = x @ w1.T + b1[None, :]
    h = jnp.where(h > 0, h, LEAKY_SLOPE * h)
    return h @ w2.T


if __name__ == "__main__":
    key = jax.random.PRNGKey(0)
    k_params, k_x = jax.random.split(key)

    # Small shapes consistent with Net(width=2) defaults.
    width = 2
    w1, b1, w2 = init_params(k_params, width=width, scale=1.0)

    # 1) Tiny batch (single tile, fully padded lane tile).
    n = 8
    x = jax.random.normal(k_x, (n, 1), dtype=jnp.float32)
    out = jax.block_until_ready(net_forward(x, w1, b1, w2))
    ref = _reference(x, w1, b1, w2)
    assert out.shape == (n, 1)
    assert jnp.allclose(out, ref, atol=1e-5, rtol=1e-5), (out, ref)

    # 2) Batch not a multiple of 128 (exercises pad + output slice path).
    n2 = 300
    x2 = jax.random.normal(jax.random.PRNGKey(1), (n2, 1), dtype=jnp.float32)
    out2 = jax.block_until_ready(net_forward(x2, w1, b1, w2))
    ref2 = _reference(x2, w1, b1, w2)
    assert out2.shape == (n2, 1)
    assert jnp.allclose(out2, ref2, atol=1e-5, rtol=1e-5)

    # 3) Batch that exactly fills the lane layout (exercises the no-pad fast
    #    path and the 2-step "parallel" grid).
    n3 = 4096
    x3 = jax.random.normal(jax.random.PRNGKey(2), (n3, 1), dtype=jnp.float32)
    out3 = jax.block_until_ready(net_forward(x3, w1, b1, w2))
    ref3 = _reference(x3, w1, b1, w2)
    assert out3.shape == (n3, 1)
    assert jnp.allclose(out3, ref3, atol=1e-5, rtol=1e-5)

    print("KERNEL_OK")
</pallas_src>

<mosaic_0001>
module attributes {stable_mosaic.version = 11 : i64} {
  func.func @_net_kernel(%arg0: i32, %arg1: memref<2xf32, #tpu.memory_space<smem>>, %arg2: memref<2xf32, #tpu.memory_space<smem>>, %arg3: memref<2xf32, #tpu.memory_space<smem>>, %arg4: memref<8x128xf32, #tpu.memory_space<vmem>>, %arg5: memref<8x128xf32, #tpu.memory_space<vmem>>) attributes {dimension_semantics = [#tpu.dimension_semantics<parallel>], iteration_bounds = array<i64: 1>, scalar_prefetch = 0 : i64, scratch_operands = 0 : i64, tpu.core_type = #tpu.core_type<tc>, window_params = [{transform_indices = @transform_0, window_bounds = array<i64: 2>}, {transform_indices = @transform_1, window_bounds = array<i64: 2>}, {transform_indices = @transform_2, window_bounds = array<i64: 2>}, {transform_indices = @transform_3, window_bounds = array<i64: 8, 128>}, {transform_indices = @transform_4, window_bounds = array<i64: 8, 128>}]} {
    %c0 = arith.constant 0 : index
    %c0_0 = arith.constant 0 : index
    %0 = vector.load %arg4[%c0, %c0_0] : memref<8x128xf32, #tpu.memory_space<vmem>>, vector<8x128xf32>
    %c0_1 = arith.constant 0 : index
    %1 = memref.load %arg1[%c0_1] : memref<2xf32, #tpu.memory_space<smem>>
    %2 = vector.broadcast %1 : f32 to vector<8x128xf32>
    %3 = arith.mulf %0, %2 : vector<8x128xf32>
    %c0_2 = arith.constant 0 : index
    %4 = memref.load %arg2[%c0_2] : memref<2xf32, #tpu.memory_space<smem>>
    %5 = vector.broadcast %4 : f32 to vector<8x128xf32>
    %6 = arith.addf %3, %5 : vector<8x128xf32>
    %cst = arith.constant 0.00999999977 : f32
    %7 = vector.broadcast %cst : f32 to vector<8x128xf32>
    %8 = arith.mulf %7, %6 : vector<8x128xf32>
    %9 = arith.maximumf %6, %8 : vector<8x128xf32>
    %c0_3 = arith.constant 0 : index
    %10 = memref.load %arg3[%c0_3] : memref<2xf32, #tpu.memory_space<smem>>
    %11 = vector.broadcast %10 : f32 to vector<8x128xf32>
    %12 = arith.mulf %11, %9 : vector<8x128xf32>
    %c1 = arith.constant 1 : index
    %13 = memref.load %arg1[%c1] : memref<2xf32, #tpu.memory_space<smem>>
    %14 = vector.broadcast %13 : f32 to vector<8x128xf32>
    %15 = arith.mulf %0, %14 : vector<8x128xf32>
    %c1_4 = arith.constant 1 : index
    %16 = memref.load %arg2[%c1_4] : memref<2xf32, #tpu.memory_space<smem>>
    %17 = vector.broadcast %16 : f32 to vector<8x128xf32>
    %18 = arith.addf %15, %17 : vector<8x128xf32>
    %cst_5 = arith.constant 0.00999999977 : f32
    %19 = vector.broadcast %cst_5 : f32 to vector<8x128xf32>
    %20 = arith.mulf %19, %18 : vector<8x128xf32>
    %21 = arith.maximumf %18, %20 : vector<8x128xf32>
    %c1_6 = arith.constant 1 : index
    %22 = memref.load %arg3[%c1_6] : memref<2xf32, #tpu.memory_space<smem>>
    %23 = vector.broadcast %22 : f32 to vector<8x128xf32>
    %24 = arith.mulf %23, %21 : vector<8x128xf32>
    %25 = arith.addf %12, %24 : vector<8x128xf32>
    %c0_7 = arith.constant 0 : index
    %c0_8 = arith.constant 0 : index
    %26 = vector.load %arg5[%c0_7, %c0_8] : memref<8x128xf32, #tpu.memory_space<vmem>>, vector<8x128xf32>
    tpu.vector_store %arg5[%c0_7, %c0_8], %25 {strides = array<i32>} : memref<8x128xf32, #tpu.memory_space<vmem>>, vector<8x128xf32>,
    return
  }
  func.func @transform_0(%arg0: i32) -> i32 {
    %c0_i32 = arith.constant 0 : i32
    %c0_i32_0 = arith.constant 0 : i32
    return %c0_i32 : i32
  }
  func.func @transform_1(%arg0: i32) -> i32 {
    %c0_i32 = arith.constant 0 : i32
    %c0_i32_0 = arith.constant 0 : i32
    return %c0_i32 : i32
  }
  func.func @transform_2(%arg0: i32) -> i32 {
    %c0_i32 = arith.constant 0 : i32
    %c0_i32_0 = arith.constant 0 : i32
    return %c0_i32 : i32
  }
  func.func @transform_3(%arg0: i32) -> (i32, i32) {
    %c0_i32 = arith.constant 0 : i32
    %c0_i32_0 = arith.constant 0 : i32
    return %arg0, %c0_i32 : i32, i32
  }
  func.func @transform_4(%arg0: i32) -> (i32, i32) {
    %c0_i32 = arith.constant 0 : i32
    %c0_i32_0 = arith.constant 0 : i32
    return %arg0, %c0_i32 : i32, i32
  }
}

</mosaic_0001>

<llo_original>
// kernel: tpu_custom_call.1
$region0: #{tpu_custom_call.1}
  #allocation0 [shape = 'u32[]', space=smem, size = 0x4, offset = 0x4, fixed_abs, tag = 'smem constant byte address 0x4 - core index']
  #allocation1 [shape = 'u32[144,128]{1,0:T(1,128)}', space=vmem, size = 0x12000, scoped, tag = 'internal scratch']
  %s0 = inlined_call_operand.hbm [shape: f32[2], index: 0, kind: input, shape index: {}]
  %s1 = inlined_call_operand.vmem [shape: f32[2], index: 1, kind: input, shape index: {}]
  %s2 = inlined_call_operand.vmem [shape: f32[2], index: 2, kind: input, shape index: {}]
  %s3 = inlined_call_operand.hbm [shape: f32[8,128], index: 3, kind: input, shape index: {}]
  %s4 = inlined_call_operand.hbm [shape: f32[8,128], index: 4, kind: output, shape index: {}]
  %s5 = sld [smem:[#allocation0]]
  $region42: #{tpu_custom_call.1} parent=0
    _
  %s7 = ssub.s32 1, %s5
  %s8 = scalar_select 0, %s7, %s5
  $region1: #{tpu_custom_call.1} parent=0
    #allocation2 [shape = 'u8[512]{0}', space=smem, size = 0x200, scoped, tag = 'input window, operand 0, single buffered']
    #allocation3 [shape = 's32[1]{0}', space=sflag, size = 0x4, scoped, tag = 'scoped memory for tpu_custom_call.1']
    #allocation4 [shape = 's32[1]{0}', space=sflag, size = 0x4, scoped, tag = 'scoped memory for tpu_custom_call.1']
    #allocation5 [shape = 's32[1]{0}', space=sflag, size = 0x4, scoped, tag = 'scoped memory for tpu_custom_call.1']
    #allocation6 [shape = 's32[1]{0}', space=sflag, size = 0x4, scoped, tag = 'scoped memory for tpu_custom_call.1']
    #allocation7 [shape = 'u8[512]{0}', space=smem, size = 0x200, scoped, tag = 'input window, operand 1, single buffered']
    #allocation8 [shape = 'u8[512]{0}', space=smem, size = 0x200, scoped, tag = 'input window, operand 2, single buffered']
    #allocation9 [shape = 's32[1]{0}', space=sflag, size = 0x4, scoped, tag = 'scoped memory for tpu_custom_call.1']
    #allocation10 [shape = 'u8[4096]{0}', space=vmem, size = 0x1000, scoped, tag = 'input window, operand 3, single buffered']
    #allocation11 [shape = 'u8[4096]{0}', space=vmem, size = 0x1000, scoped, tag = 'output window, operand 0, single buffered']
    %9 = vsyncpa [#allocation5], 0
    %10 = vsyncpa [#allocation6], 0
    %11 = vsyncpa [#allocation9], 0
    %12 = vsyncpa [#allocation3], 0
    %13 = vsyncpa [#allocation4], 0
    // Predicated region
    $region2: #{tpu_custom_call.1} parent=1 // pred_check
      _
    $region3: #{tpu_custom_call.1} parent=1 // pred_check_branch
      %15 = sbr.rel (0) target = $region5
    $region4: #{tpu_custom_call.1} parent=1 // pred_region
      %s17 = ssub.s32 16, 16
      %18 = vsyncadd [#allocation5], %s17
      %21 = dma.hbm_to_smem %s0, 16, [#allocation2], [#allocation5]
    $region5: #{tpu_custom_call.1} parent=1 // pred_fallthru
      _
    // Predicated region
    $region6: #{tpu_custom_call.1} parent=1 // pred_check
      _
    $region7: #{tpu_custom_call.1} parent=1 // pred_check_branch
      %23 = sbr.rel (0) target = $region9
    $region8: #{tpu_custom_call.1} parent=1 // pred_region
      %s25 = ssub.s32 16, 16
      %26 = vsyncadd [#allocation6], %s25
      %s28 = sshll.u32 %s1, 4
      %s29 = int_to_ptr.vmem [resolvable:$true] %s28
      %31 = dma.vmem_to_smem %s29, 16, [#allocation7], [#allocation6]
    $region9: #{tpu_custom_call.1} parent=1 // pred_fallthru
      _
    // Predicated region
    $region10: #{tpu_custom_call.1} parent=1 // pred_check
      _
    $region11: #{tpu_custom_call.1} parent=1 // pred_check_branch
      %33 = sbr.rel (0) target = $region13
    $region12: #{tpu_custom_call.1} parent=1 // pred_region
      %s35 = ssub.s32 16, 16
      %36 = vsyncadd [#allocation9], %s35
      %s38 = sshll.u32 %s2, 4
      %s39 = int_to_ptr.vmem [resolvable:$true] %s38
      %41 = dma.vmem_to_smem %s39, 16, [#allocation8], [#allocation9]
    $region13: #{tpu_custom_call.1} parent=1 // pred_fallthru
      _
    // Predicated region
    $region14: #{tpu_custom_call.1} parent=1 // pred_check
      _
    $region15: #{tpu_custom_call.1} parent=1 // pred_check_branch
      %43 = sbr.rel (0) target = $region17
    $region16: #{tpu_custom_call.1} parent=1 // pred_region
      %s45 = ssub.s32 128, 128
      %46 = vsyncadd [#allocation3], %s45
      %s48 = sshll.u32 [#allocation10], 4
      %s49 = int_to_ptr.vmem [resolvable:$true] %s48
      %51 = dma.hbm_to_vmem [thread:$0]  %s3, 128, %s49, [#allocation3]
    $region17: #{tpu_custom_call.1} parent=1 // pred_fallthru
      _
    // Predicated region
    $region18: #{tpu_custom_call.1} parent=1 // pred_check
      _
    $region19: #{tpu_custom_call.1} parent=1 // pred_check_branch
      %53 = sbr.rel (0) target = $region21
    $region20: #{tpu_custom_call.1} parent=1 // pred_region
      %54 = dma.done [#allocation5], 16
    $region21: #{tpu_custom_call.1} parent=1 // pred_fallthru
      _
    // Predicated region
    $region22: #{tpu_custom_call.1} parent=1 // pred_check
      _
    $region23: #{tpu_custom_call.1} parent=1 // pred_check_branch
      %56 = sbr.rel (0) target = $region25
    $region24: #{tpu_custom_call.1} parent=1 // pred_region
      %57 = dma.done [#allocation6], 16
    $region25: #{tpu_custom_call.1} parent=1 // pred_fallthru
      _
    // Predicated region
    $region26: #{tpu_custom_call.1} parent=1 // pred_check
      _
    $region27: #{tpu_custom_call.1} parent=1 // pred_check_branch
      %59 = sbr.rel (0) target = $region29
    $region28: #{tpu_custom_call.1} parent=1 // pred_region
      %60 = dma.done [#allocation9], 16
    $region29: #{tpu_custom_call.1} parent=1 // pred_fallthru
      _
    // Predicated region
    $region30: #{tpu_custom_call.1} parent=1 // pred_check
      _
    $region31: #{tpu_custom_call.1} parent=1 // pred_check_branch
      %62 = sbr.rel (0) target = $region33
    $region32: #{tpu_custom_call.1} parent=1 // pred_region
      %63 = dma.done [#allocation3], 128
    $region33: #{tpu_custom_call.1} parent=1 // pred_fallthru
      _
    %64 = sfence
    %v65 = vld [vmem:[#allocation10] sm:$0xff]
    %s66 = sld [smem:[#allocation2]]
    %v67 = vstv %s66
    %v68 = vmul.f32 %v65, %v67
    %s69 = sld [smem:[#allocation7]]
    %v70 = vstv %s69
    %v71 = vadd.f32 %v68, %v70
    %v72 = vmul.f32 %v71, 0.01
    %v73 = vmax.f32 %v71, %v72
    %s74 = sld [smem:[#allocation8]]
    %v75 = vstv %s74
    %v76 = vmul.f32 %v75, %v73
    %s77 = sld [smem:[#allocation2 + $0x1]]
    %v78 = vstv %s77
    %v79 = vmul.f32 %v65, %v78
    %s80 = sld [smem:[#allocation7 + $0x1]]
    %v81 = vstv %s80
    %v82 = vadd.f32 %v79, %v81
    %v83 = vmul.f32 %v82, 0.01
    %v84 = vmax.f32 %v82, %v83
    %s85 = sld [smem:[#allocation8 + $0x1]]
    %v86 = vstv %s85
    %v87 = vmul.f32 %v86, %v84
    %v88 = vadd.f32 %v76, %v87
    %89 = vst [vmem:[#allocation11] sm:$0xff] %v88
    // Predicated region
    $region34: #{tpu_custom_call.1} parent=1 // pred_check
      _
    $region35: #{tpu_custom_call.1} parent=1 // pred_check_branch
      %91 = sbr.rel (0) target = $region37
    $region36: #{tpu_custom_call.1} parent=1 // pred_region
      %s93 = ssub.s32 128, 128
      %94 = vsyncadd [#allocation4], %s93
      %s96 = sshll.u32 [#allocation11], 4
      %s97 = int_to_ptr.vmem [resolvable:$true] %s96
      %99 = dma.vmem_to_hbm [thread:$0]  %s97, 128, %s4, [#allocation4]
    $region37: #{tpu_custom_call.1} parent=1 // pred_fallthru
      _
    // Predicated region
    $region38: #{tpu_custom_call.1} parent=1 // pred_check
      _
    $region39: #{tpu_custom_call.1} parent=1 // pred_check_branch
      %101 = sbr.rel (0) target = $region41
    $region40: #{tpu_custom_call.1} parent=1 // pred_region
      %102 = dma.done [#allocation4], 128
    $region41: #{tpu_custom_call.1} parent=1 // pred_fallthru
      _
    %103 = vsyncpa [#allocation3], 1
    %104 = vsyncpa [#allocation4], 1
    %105 = vsyncpa [#allocation5], 1
    %106 = vsyncpa [#allocation6], 1
    %107 = vsyncpa [#allocation9], 1

</llo_original>
